<compile_context>
chip_gen: v7x
topology: tpu7x:2x2x1
jax: 0.10.0
libtpu: 0.0.40
codegen_flags: <defaults>
</compile_context>

<pallas_src>
import jax
import jax.numpy as jnp
from jax import lax
from jax.experimental import pallas as pl
from jax.experimental.pallas import tpu as pltpu


def _round_up(x, m):
    return (x + m - 1) // m * m


def _cdiv(a, b):
    return (a + b - 1) // b


def _mlp_kernel(x_ref, w1_ref, w2_ref, w3_ref, b_ref, o_ref):
    # x_ref: (TB, 36) f32, natural (batch, feature) layout straight from HBM.
    # Biases are concatenated into one (97, 1) f32 operand: [b1(64); b2(32); b3(1)].
    b1 = b_ref[0:64, :]          # (64, 1)
    b2 = b_ref[64:96, :]         # (32, 1)
    b3 = b_ref[96:97, :]         # (1, 1)

    x_bf = x_ref[...].astype(jnp.bfloat16)                      # (TB, 36)

    # fc1 + ReLU, batch-on-lanes: contract the feature axes of w1 (64,36) and
    # x (TB,36) -> (64, TB).  A @ B^T form; MXU-native, no materialized
    # transpose of the x tile, f32 accumulation.
    h1 = lax.dot_general(w1_ref[...], x_bf,
                         (((1,), (1,)), ((), ())),
                         preferred_element_type=jnp.float32)    # (64, TB)
    h1 = jnp.maximum(h1 + b1, 0.0)

    # TODO(synk): Dropout(p=0.1) is identity in eval mode; training-mode
    # masking (pltpu.prng_random_bits + 1/(1-p) rescale) is not emitted.

    # fc2 + ReLU: (32, 64) @ (64, TB) on the MXU.
    h2 = jnp.dot(w2_ref[...], h1.astype(jnp.bfloat16),
                 preferred_element_type=jnp.float32)            # (32, TB)
    h2 = jnp.maximum(h2 + b2, 0.0)

    # fc3 on the MXU: w3 zero-padded to 8 rows (row 0 is the real one) so the
    # near-idle MXU does the 32-wide reduction instead of the VPU/XLU.
    z = jnp.dot(w3_ref[...], h2.astype(jnp.bfloat16),
                preferred_element_type=jnp.float32)             # (8, TB)
    logits = z[0:1, :] + b3                                     # (1, TB)

    # Numerically stable sigmoid: exp of a non-positive argument only.
    e = jnp.exp(-jnp.abs(logits))
    o_ref[...] = jnp.where(logits >= 0.0, 1.0 / (1.0 + e), e / (1.0 + e))


def net_forward(x, params, *, max_batch_tile=8192):
    """x: (B, F=36) f32; params in PyTorch layout (w: (out, in), b: (out,))."""
    w1, b1, w2, b2, w3, b3 = params
    x = x.astype(jnp.float32)
    B, F = x.shape

    # ---- batch tiling -------------------------------------------------------
    if B <= 128:
        # Single block equal to the full array: always legal, no padding.
        TB, steps = B, 1
    else:
        # Lane-aligned tile derived from B; >=2 grid steps so v7x's two
        # TensorCores both get work; capped so the VMEM working set stays small
        # (x block is the dominant buffer: TB*512 B padded, double-buffered).
        steps = max(2, _cdiv(B, max_batch_tile))
        TB = min(max_batch_tile, _round_up(_cdiv(B, steps), 128))
        steps = _cdiv(B, TB)
        # Note: if B is not a multiple of TB, the last block is partial; Pallas
        # clamps the DMA (OOB input lanes are garbage but each batch column is
        # independent, and OOB output writes are dropped), so no x copy/pad.

    # ---- operand prep (tiny, one-time; weights stay resident in VMEM) -------
    w1b = w1.astype(jnp.bfloat16)                                  # (64, 36)
    w2b = w2.astype(jnp.bfloat16)                                  # (32, 64)
    w3b = jnp.pad(w3.astype(jnp.bfloat16), ((0, 7), (0, 0)))       # (8, 32)
    bcat = jnp.concatenate(
        [b1.reshape(-1), b2.reshape(-1), b3.reshape(-1)]
    ).reshape(-1, 1).astype(jnp.float32)                           # (97, 1)

    const2d = lambda arr: pl.BlockSpec(arr.shape, lambda i: (0, 0))

    # Explicit VMEM budget: ~TB*2 KiB working set; give ~2x headroom, capped
    # well under v7x's 64 MiB physical VMEM.
    vmem_limit = int(min(48 * 2**20, 4 * 2**20 + TB * 4096))

    out = pl.pallas_call(
        _mlp_kernel,
        out_shape=jax.ShapeDtypeStruct((1, B), jnp.float32),
        grid=(steps,),
        in_specs=[
            pl.BlockSpec((TB, F), lambda i: (i, 0)),   # x tile moves with batch
            const2d(w1b),
            const2d(w2b),
            const2d(w3b),
            const2d(bcat),
        ],
        out_specs=pl.BlockSpec((1, TB), lambda i: (0, i)),   # lane-dense output
        compiler_params=pltpu.CompilerParams(
            dimension_semantics=("parallel",),
            vmem_limit_bytes=vmem_limit),
    )(x, w1b, w2b, w3b, bcat)

    return out.reshape(B, 1)


def init_params(key, input_size=36):
    """PyTorch-layout params with nn.Linear-style U[-1/sqrt(fan_in), +] init."""
    dims = [(input_size, 64), (64, 32), (32, 1)]
    params = []
    for fan_in, fan_out in dims:
        key, kw, kb = jax.random.split(key, 3)
        bound = float(fan_in) ** -0.5
        w = jax.random.uniform(kw, (fan_out, fan_in), jnp.float32, -bound, bound)
        b = jax.random.uniform(kb, (fan_out,), jnp.float32, -bound, bound)
        params += [w, b]
    return tuple(params)


def reference_forward(x, params):
    """Pure-JAX reference mirroring the kernel numerics (bf16 MXU inputs,
    f32 accumulation)."""
    w1, b1, w2, b2, w3, b3 = params
    bf = jnp.bfloat16
    h1 = jnp.maximum(
        jnp.dot(x.astype(bf), w1.T.astype(bf),
                preferred_element_type=jnp.float32) + b1, 0.0)
    h2 = jnp.maximum(
        jnp.dot(h1.astype(bf), w2.T.astype(bf),
                preferred_element_type=jnp.float32) + b2, 0.0)
    logits = jnp.dot(h2.astype(bf), w3.T.astype(bf),
                     preferred_element_type=jnp.float32) + b3
    return jax.nn.sigmoid(logits)


if __name__ == "__main__":
    key = jax.random.PRNGKey(0)
    key, kx_small, kx_big = jax.random.split(key, 3)

    input_size = 36
    params = init_params(key, input_size)
    fwd = jax.jit(net_forward, static_argnames=("max_batch_tile",))

    for batch, kx in ((8, kx_small), (512, kx_big)):
        x = jax.random.normal(kx, (batch, input_size), jnp.float32)
        out = jax.block_until_ready(fwd(x, params))
        ref = reference_forward(x, params)

        assert out.shape == (batch, 1), out.shape
        assert bool(jnp.all(jnp.isfinite(out)))
        assert bool(jnp.all((out >= 0.0) & (out <= 1.0)))
        max_err = float(jnp.max(jnp.abs(out - ref)))
        assert max_err < 2e-3, max_err

    print("KERNEL_OK")
</pallas_src>

<mosaic_0001>
module attributes {stable_mosaic.version = 11 : i64} {
  func.func @_mlp_kernel(%arg0: i32, %arg1: memref<8x36xf32, #tpu.memory_space<vmem>>, %arg2: memref<64x36xbf16, #tpu.memory_space<vmem>>, %arg3: memref<32x64xbf16, #tpu.memory_space<vmem>>, %arg4: memref<8x32xbf16, #tpu.memory_space<vmem>>, %arg5: memref<97x1xf32, #tpu.memory_space<vmem>>, %arg6: memref<1x8xf32, #tpu.memory_space<vmem>>) attributes {dimension_semantics = [#tpu.dimension_semantics<parallel>], iteration_bounds = array<i64: 1>, scalar_prefetch = 0 : i64, scratch_operands = 0 : i64, tpu.core_type = #tpu.core_type<tc>, window_params = [{transform_indices = @transform_0, window_bounds = array<i64: 8, 36>}, {pipeline_mode = #tpu.pipeline_mode<synchronous>, transform_indices = @transform_1, window_bounds = array<i64: 64, 36>}, {pipeline_mode = #tpu.pipeline_mode<synchronous>, transform_indices = @transform_2, window_bounds = array<i64: 32, 64>}, {pipeline_mode = #tpu.pipeline_mode<synchronous>, transform_indices = @transform_3, window_bounds = array<i64: 8, 32>}, {pipeline_mode = #tpu.pipeline_mode<synchronous>, transform_indices = @transform_4, window_bounds = array<i64: 97, 1>}, {transform_indices = @transform_5, window_bounds = array<i64: 1, 8>}]} {
    %c0 = arith.constant 0 : index
    %c0_0 = arith.constant 0 : index
    %0 = vector.load %arg5[%c0, %c0_0] : memref<97x1xf32, #tpu.memory_space<vmem>>, vector<64x1xf32>
    %c64 = arith.constant 64 : index
    %c0_1 = arith.constant 0 : index
    %1 = vector.load %arg5[%c64, %c0_1] : memref<97x1xf32, #tpu.memory_space<vmem>>, vector<32x1xf32>
    %c96 = arith.constant 96 : index
    %c0_2 = arith.constant 0 : index
    %2 = vector.load %arg5[%c96, %c0_2] : memref<97x1xf32, #tpu.memory_space<vmem>>, vector<1x1xf32>
    %c0_3 = arith.constant 0 : index
    %c0_4 = arith.constant 0 : index
    %3 = vector.load %arg1[%c0_3, %c0_4] : memref<8x36xf32, #tpu.memory_space<vmem>>, vector<8x36xf32>
    %4 = arith.truncf %3 : vector<8x36xf32> to vector<8x36xbf16>
    %c0_5 = arith.constant 0 : index
    %c0_6 = arith.constant 0 : index
    %5 = vector.load %arg2[%c0_5, %c0_6] : memref<64x36xbf16, #tpu.memory_space<vmem>>, vector<64x36xbf16>
    %cst = arith.constant dense<0.000000e+00> : vector<64x8xf32>
    %6 = tpu.matmul %5, %4, %cst {dimension_numbers = #tpu.dot_dimension_numbers<[1], [1], [0], [0], [0, 0, 1, 0], [], []>} : vector<64x36xbf16>, vector<8x36xbf16>, vector<64x8xf32> -> vector<64x8xf32>
    %7 = vector.broadcast %0 : vector<64x1xf32> to vector<64x8xf32>
    %8 = arith.addf %6, %7 : vector<64x8xf32>
    %cst_7 = arith.constant 0.000000e+00 : f32
    %9 = vector.broadcast %cst_7 : f32 to vector<64x8xf32>
    %10 = arith.maximumf %8, %9 : vector<64x8xf32>
    %c0_8 = arith.constant 0 : index
    %c0_9 = arith.constant 0 : index
    %11 = vector.load %arg3[%c0_8, %c0_9] : memref<32x64xbf16, #tpu.memory_space<vmem>>, vector<32x64xbf16>
    %12 = arith.truncf %10 : vector<64x8xf32> to vector<64x8xbf16>
    %cst_10 = arith.constant dense<0.000000e+00> : vector<32x8xf32>
    %13 = tpu.matmul %11, %12, %cst_10 {dimension_numbers = #tpu.dot_dimension_numbers<[1], [0], [0], [1], [0, 0, 1, 1], [], []>} : vector<32x64xbf16>, vector<64x8xbf16>, vector<32x8xf32> -> vector<32x8xf32>
    %14 = vector.broadcast %1 : vector<32x1xf32> to vector<32x8xf32>
    %15 = arith.addf %13, %14 : vector<32x8xf32>
    %cst_11 = arith.constant 0.000000e+00 : f32
    %16 = vector.broadcast %cst_11 : f32 to vector<32x8xf32>
    %17 = arith.maximumf %15, %16 : vector<32x8xf32>
    %c0_12 = arith.constant 0 : index
    %c0_13 = arith.constant 0 : index
    %18 = vector.load %arg4[%c0_12, %c0_13] : memref<8x32xbf16, #tpu.memory_space<vmem>>, vector<8x32xbf16>
    %19 = arith.truncf %17 : vector<32x8xf32> to vector<32x8xbf16>
    %cst_14 = arith.constant dense<0.000000e+00> : vector<8x8xf32>
    %20 = tpu.matmul %18, %19, %cst_14 {dimension_numbers = #tpu.dot_dimension_numbers<[1], [0], [0], [1], [0, 0, 1, 1], [], []>} : vector<8x32xbf16>, vector<32x8xbf16>, vector<8x8xf32> -> vector<8x8xf32>
    %21 = vector.extract_strided_slice %20 {offsets = [0, 0], sizes = [1, 8], strides = [1, 1]} : vector<8x8xf32> to vector<1x8xf32>
    %22 = vector.broadcast %2 : vector<1x1xf32> to vector<1x8xf32>
    %23 = arith.addf %21, %22 : vector<1x8xf32>
    %24 = math.absf %23 : vector<1x8xf32>
    %cst_15 = arith.constant 0.000000e+00 : f32
    %25 = vector.broadcast %cst_15 : f32 to vector<1x8xf32>
    %26 = arith.subf %25, %24 : vector<1x8xf32>
    %27 = math.exp %26 : vector<1x8xf32>
    %cst_16 = arith.constant 0.000000e+00 : f32
    %28 = vector.broadcast %cst_16 : f32 to vector<1x8xf32>
    %29 = arith.cmpf oge, %23, %28 : vector<1x8xf32>
    %cst_17 = arith.constant 1.000000e+00 : f32
    %30 = vector.broadcast %cst_17 : f32 to vector<1x8xf32>
    %31 = arith.addf %30, %27 : vector<1x8xf32>
    %cst_18 = arith.constant 1.000000e+00 : f32
    %32 = vector.broadcast %cst_18 : f32 to vector<1x8xf32>
    %33 = arith.divf %32, %31 : vector<1x8xf32>
    %cst_19 = arith.constant 1.000000e+00 : f32
    %34 = vector.broadcast %cst_19 : f32 to vector<1x8xf32>
    %35 = arith.addf %34, %27 : vector<1x8xf32>
    %36 = arith.divf %27, %35 : vector<1x8xf32>
    %37 = arith.select %29, %33, %36 : vector<1x8xi1>, vector<1x8xf32>
    %c0_20 = arith.constant 0 : index
    %c0_21 = arith.constant 0 : index
    %38 = vector.load %arg6[%c0_20, %c0_21] : memref<1x8xf32, #tpu.memory_space<vmem>>, vector<1x8xf32>
    tpu.vector_store %arg6[%c0_20, %c0_21], %37 {strides = array<i32>} : memref<1x8xf32, #tpu.memory_space<vmem>>, vector<1x8xf32>,
    return
  }
  func.func @transform_0(%arg0: i32) -> (i32, i32) {
    %c0_i32 = arith.constant 0 : i32
    %c0_i32_0 = arith.constant 0 : i32
    return %arg0, %c0_i32 : i32, i32
  }
  func.func @transform_1(%arg0: i32) -> (i32, i32) {
    %c0_i32 = arith.constant 0 : i32
    %c0_i32_0 = arith.constant 0 : i32
    %c0_i32_1 = arith.constant 0 : i32
    return %c0_i32, %c0_i32_0 : i32, i32
  }
  func.func @transform_2(%arg0: i32) -> (i32, i32) {
    %c0_i32 = arith.constant 0 : i32
    %c0_i32_0 = arith.constant 0 : i32
    %c0_i32_1 = arith.constant 0 : i32
    return %c0_i32, %c0_i32_0 : i32, i32
  }
  func.func @transform_3(%arg0: i32) -> (i32, i32) {
    %c0_i32 = arith.constant 0 : i32
    %c0_i32_0 = arith.constant 0 : i32
    %c0_i32_1 = arith.constant 0 : i32
    return %c0_i32, %c0_i32_0 : i32, i32
  }
  func.func @transform_4(%arg0: i32) -> (i32, i32) {
    %c0_i32 = arith.constant 0 : i32
    %c0_i32_0 = arith.constant 0 : i32
    %c0_i32_1 = arith.constant 0 : i32
    return %c0_i32, %c0_i32_0 : i32, i32
  }
  func.func @transform_5(%arg0: i32) -> (i32, i32) {
    %c0_i32 = arith.constant 0 : i32
    %c0_i32_0 = arith.constant 0 : i32
    return %c0_i32, %arg0 : i32, i32
  }
}

</mosaic_0001>

<llo_original>
// kernel: net_forward.1
$region0: #{net_forward.1}
  #allocation0 [shape = 'u32[]', space=smem, size = 0x4, offset = 0x4, fixed_abs, tag = 'smem constant byte address 0x4 - core index']
  #allocation1 [shape = 'u32[144,128]{1,0:T(1,128)}', space=vmem, size = 0x12000, scoped, tag = 'internal scratch']
  %s0 = inlined_call_operand.vmem [shape: f32[8,36], index: 0, kind: input, shape index: {}]
  %s1 = inlined_call_operand.vmem [shape: bf16[64,36], index: 1, kind: input, shape index: {}]
  %s2 = inlined_call_operand.vmem [shape: bf16[32,64], index: 2, kind: input, shape index: {}]
  %s3 = inlined_call_operand.vmem [shape: bf16[8,32], index: 3, kind: input, shape index: {}]
  %s4 = inlined_call_operand.vmem [shape: f32[97,1], index: 4, kind: input, shape index: {}]
  %s5 = inlined_call_operand.hbm [shape: f32[1,8], index: 5, kind: output, shape index: {}]
  %s6 = sld [smem:[#allocation0]]
  $region30: #{net_forward.1} parent=0
    _
  %s8 = ssub.s32 1, %s6
  %s9 = scalar_select 0, %s8, %s6
  $region1: #{net_forward.1} parent=0
    #allocation2 [shape = 'u8[512]{0}', space=vmem, size = 0x400, scoped, tag = 'output window, operand 0, single buffered']
    #allocation3 [shape = 's32[1]{0}', space=sflag, size = 0x4, scoped, tag = 'scoped memory for net_forward.1']
    %10 = vsyncpa [#allocation3], 0
    // Predicated region
    $region2: #{net_forward.1} parent=1 // pred_check
      _
    $region3: #{net_forward.1} parent=1 // pred_check_branch
      %12 = sbr.rel (0) target = $region5
    $region4: #{net_forward.1} parent=1 // pred_region
      _
    $region5: #{net_forward.1} parent=1 // pred_fallthru
      _
    // Predicated region
    $region6: #{net_forward.1} parent=1 // pred_check
      _
    $region7: #{net_forward.1} parent=1 // pred_check_branch
      %14 = sbr.rel (0) target = $region9
    $region8: #{net_forward.1} parent=1 // pred_region
      _
    $region9: #{net_forward.1} parent=1 // pred_fallthru
      _
    // Predicated region
    $region10: #{net_forward.1} parent=1 // pred_check
      _
    $region11: #{net_forward.1} parent=1 // pred_check_branch
      %16 = sbr.rel (0) target = $region13
    $region12: #{net_forward.1} parent=1 // pred_region
      _
    $region13: #{net_forward.1} parent=1 // pred_fallthru
      _
    // Predicated region
    $region14: #{net_forward.1} parent=1 // pred_check
      _
    $region15: #{net_forward.1} parent=1 // pred_check_branch
      %18 = sbr.rel (0) target = $region17
    $region16: #{net_forward.1} parent=1 // pred_region
      _
    $region17: #{net_forward.1} parent=1 // pred_fallthru
      _
    // Predicated region
    $region18: #{net_forward.1} parent=1 // pred_check
      _
    $region19: #{net_forward.1} parent=1 // pred_check_branch
      %20 = sbr.rel (0) target = $region21
    $region20: #{net_forward.1} parent=1 // pred_region
      _
    $region21: #{net_forward.1} parent=1 // pred_fallthru
      _
    %v22 = vld [vmem:[%s4] sm:$0xff]
    %v23 = vld [vmem:[%s4 + $0x8] sm:$0xff]
    %v24 = vld [vmem:[%s4 + $0x10] sm:$0xff]
    %v25 = vld [vmem:[%s4 + $0x18] sm:$0xff]
    %v26 = vld [vmem:[%s4 + $0x20] sm:$0xff]
    %v27 = vld [vmem:[%s4 + $0x28] sm:$0xff]
    %v28 = vld [vmem:[%s4 + $0x30] sm:$0xff]
    %v29 = vld [vmem:[%s4 + $0x38] sm:$0xff]
    %v30 = vld [vmem:[%s4 + $0x40] sm:$0xff]
    %v31 = vld [vmem:[%s4 + $0x48] sm:$0xff]
    %v32 = vld [vmem:[%s4 + $0x50] sm:$0xff]
    %v33 = vld [vmem:[%s4 + $0x58] sm:$0xff]
    %v34 = vld [vmem:[%s4 + $0x60] sm:$0x1]
    %v35 = vld [vmem:[%s0] sm:$0xff]
    %v36 = vpack.c.bf16 %v35, %v35
    %v37 = vld [vmem:[%s1] sm:$0xf]
    %v38 = vld [vmem:[%s1 + $0x4] sm:$0xf]
    %v39 = vld [vmem:[%s1 + $0x8] sm:$0xf]
    %v40 = vld [vmem:[%s1 + $0xc] sm:$0xf]
    %v41 = vld [vmem:[%s1 + $0x10] sm:$0xf]
    %v42 = vld [vmem:[%s1 + $0x14] sm:$0xf]
    %v43 = vld [vmem:[%s1 + $0x18] sm:$0xf]
    %v44 = vld [vmem:[%s1 + $0x1c] sm:$0xf]
    %46 = vset.pattern.permute.xlu0 0
    %47 = vperm.xlu0 %46, %v22
    %v48 = vpop.permute.xlu0 %47
    %51 = vset.pattern.permute.xlu0 0
    %52 = vperm.xlu0 %51, %v23
    %v53 = vpop.permute.xlu0 %52
    %56 = vset.pattern.permute.xlu0 0
    %57 = vperm.xlu0 %56, %v24
    %v58 = vpop.permute.xlu0 %57
    %61 = vset.pattern.permute.xlu0 0
    %62 = vperm.xlu0 %61, %v25
    %v63 = vpop.permute.xlu0 %62
    %66 = vset.pattern.permute.xlu0 0
    %67 = vperm.xlu0 %66, %v26
    %v68 = vpop.permute.xlu0 %67
    %71 = vset.pattern.permute.xlu0 0
    %72 = vperm.xlu0 %71, %v27
    %v73 = vpop.permute.xlu0 %72
    %76 = vset.pattern.permute.xlu0 0
    %77 = vperm.xlu0 %76, %v28
    %v78 = vpop.permute.xlu0 %77
    %81 = vset.pattern.permute.xlu0 0
    %82 = vperm.xlu0 %81, %v29
    %v83 = vpop.permute.xlu0 %82
    %v93 = vunpack.c.l.b16 %v37
    %v94 = vunpack.c.l.b16 %v38
    %v95 = vunpack.c.l.b16 %v39
    %v96 = vunpack.c.l.b16 %v40
    %v97 = vunpack.c.l.b16 %v41
    %v98 = vunpack.c.l.b16 %v42
    %v99 = vunpack.c.l.b16 %v43
    %v100 = vunpack.c.l.b16 %v44
    %v101 = vpack.c.b16 %v94, %v93
    %v102 = vpack.c.b16 %v96, %v95
    %v103 = vpack.c.b16 %v98, %v97
    %v104 = vpack.c.b16 %v100, %v99
    %vm105 = vcmask 293888
    %v107 = vsel %vm105, %v101, 0
    %v110 = vsel %vm105, %v102, 0
    %v113 = vsel %vm105, %v103, 0
    %v116 = vsel %vm105, %v104, 0
    %v119 = vsel %vm105, %v36, 0
    %121 = vmatprep.subr.bf16.mxu0 0
    %122 = vmatpush1.bf16.xpose.msra.mxu0 %v119
    %123 = vmatprep.subr.bf16.mxu0 0
    %124 = vmatpush1.bf16.xpose.msra.mxu0 0
    %125 = vmatprep.subr.bf16.mxu0 0
    %126 = vmatpush1.bf16.xpose.msra.mxu0 0
    %127 = vmatprep.subr.bf16.mxu0 0
    %128 = vmatpush1.bf16.xpose.msra.mxu0 0
    %129 = vmatprep.subr.bf16.mxu0 0
    %130 = vmatpush1.bf16.xpose.msra.mxu0 0
    %131 = vmatprep.subr.bf16.mxu0 0
    %132 = vmatpush1.bf16.xpose.msra.mxu0 0
    %133 = vmatprep.subr.bf16.mxu0 0
    %134 = vmatpush1.bf16.xpose.msra.mxu0 0
    %135 = vmatprep.subr.bf16.mxu0 0
    %136 = vmatpush1.bf16.xpose.msra.mxu0 0
    %137 = vmatprep.subr.bf16.mxu0 0
    %138 = vmatpush1.bf16.xpose.msra.mxu0 0
    %139 = vmatprep.subr.bf16.mxu0 0
    %140 = vmatpush1.bf16.xpose.msra.mxu0 0
    %141 = vmatprep.subr.bf16.mxu0 0
    %142 = vmatpush1.bf16.xpose.msra.mxu0 0
    %143 = vmatprep.subr.bf16.mxu0 0
    %144 = vmatpush1.bf16.xpose.msra.mxu0 0
    %145 = vmatprep.subr.bf16.mxu0 0
    %146 = vmatpush1.bf16.xpose.msra.mxu0 0
    %147 = vmatprep.subr.bf16.mxu0 0
    %148 = vmatpush1.bf16.xpose.msra.mxu0 0
    %149 = vmatprep.subr.bf16.mxu0 0
    %150 = vmatpush1.bf16.xpose.msra.mxu0 0
    %151 = vmatprep.subr.bf16.mxu0 0
    %152 = vmatpush1.bf16.xpose.msra.mxu0 0
    %153 = vmatprep.mubr.bf16.mxu0 0
    %154 = vmatmul.mubr.bf16.gmra.mrb[0].mxu0 %v107
    %v155 = vpop.f32.mrb[0].mxu0
    %v156 = vadd.f32 %v48, %v155
    %v157 = vpop.f32.mrb[0].mxu0
    %v158 = vpop.f32.mrb[0].mxu0
    %v159 = vadd.f32 %v53, %v158
    %v160 = vpop.f32.mrb[0].mxu0
    %161 = vmatprep.mubr.bf16.mxu0 0
    %162 = vmatmul.mubr.bf16.gmra.mrb[0].mxu0 %v110
    %v163 = vpop.f32.mrb[0].mxu0
    %v164 = vadd.f32 %v58, %v163
    %v165 = vpop.f32.mrb[0].mxu0
    %v166 = vpop.f32.mrb[0].mxu0
    %v167 = vadd.f32 %v63, %v166
    %v168 = vpop.f32.mrb[0].mxu0
    %169 = vmatprep.mubr.bf16.mxu0 0
    %170 = vmatmul.mubr.bf16.gmra.mrb[0].mxu0 %v113
    %v171 = vpop.f32.mrb[0].mxu0
    %v172 = vadd.f32 %v68, %v171
    %v173 = vpop.f32.mrb[0].mxu0
    %v174 = vpop.f32.mrb[0].mxu0
    %v175 = vadd.f32 %v73, %v174
    %v176 = vpop.f32.mrb[0].mxu0
    %177 = vmatprep.mubr.bf16.mxu0 0
    %178 = vmatmul.mubr.bf16.gmra.mrb[0].mxu0 %v116
    %v179 = vpop.f32.mrb[0].mxu0
    %v180 = vadd.f32 %v78, %v179
    %v181 = vpop.f32.mrb[0].mxu0
    %v182 = vpop.f32.mrb[0].mxu0
    %v183 = vadd.f32 %v83, %v182
    %v184 = vpop.f32.mrb[0].mxu0
    %185 = vdwg.mxu0
    %v186 = vmax.f32 %v156, 0.0
    %v187 = vmax.f32 %v159, 0.0
    %v188 = vmax.f32 %v164, 0.0
    %v189 = vmax.f32 %v167, 0.0
    %v190 = vmax.f32 %v172, 0.0
    %v191 = vmax.f32 %v175, 0.0
    %v192 = vmax.f32 %v180, 0.0
    %v193 = vmax.f32 %v183, 0.0
    %v194 = vld [vmem:[%s2] sm:$0xf]
    %v195 = vld [vmem:[%s2 + $0x4] sm:$0xf]
    %v196 = vld [vmem:[%s2 + $0x8] sm:$0xf]
    %v197 = vld [vmem:[%s2 + $0xc] sm:$0xf]
    %v198 = vpack.c.bf16 %v187, %v186
    %v199 = vpack.c.bf16 %v189, %v188
    %v200 = vpack.c.bf16 %v191, %v190
    %v201 = vpack.c.bf16 %v193, %v192
    %203 = vset.pattern.permute.xlu0 0
    %204 = vperm.xlu0 %203, %v30
    %v205 = vpop.permute.xlu0 %204
    %208 = vset.pattern.permute.xlu0 0
    %209 = vperm.xlu0 %208, %v31
    %v210 = vpop.permute.xlu0 %209
    %213 = vset.pattern.permute.xlu0 0
    %214 = vperm.xlu0 %213, %v32
    %v215 = vpop.permute.xlu0 %214
    %218 = vset.pattern.permute.xlu0 0
    %219 = vperm.xlu0 %218, %v33
    %v220 = vpop.permute.xlu0 %219
    %v226 = vunpack.c.l.b16 %v194
    %v227 = vunpack.c.l.b16 %v195
    %v228 = vunpack.c.l.b16 %v196
    %v229 = vunpack.c.l.b16 %v197
    %v230 = vpack.c.b16 %v227, %v226
    %v231 = vpack.c.b16 %v229, %v228
    %vm232 = vcmask 523264
    %v234 = vsel %vm232, %v230, 0
    %v237 = vsel %vm232, %v231, 0
    %239 = vmatprep.subr.bf16.mxu0 0
    %240 = vmatpush1.bf16.msra.mxu0 %v198
    %241 = vmatprep.subr.bf16.mxu0 0
    %242 = vmatpush1.bf16.msra.mxu0 %v199
    %243 = vmatprep.subr.bf16.mxu0 0
    %244 = vmatpush1.bf16.msra.mxu0 %v200
    %245 = vmatprep.subr.bf16.mxu0 0
    %246 = vmatpush1.bf16.msra.mxu0 %v201
    %247 = vmatprep.subr.bf16.mxu0 0
    %248 = vmatpush1.bf16.msra.mxu0 0
    %249 = vmatprep.subr.bf16.mxu0 0
    %250 = vmatpush1.bf16.msra.mxu0 0
    %251 = vmatprep.subr.bf16.mxu0 0
    %252 = vmatpush1.bf16.msra.mxu0 0
    %253 = vmatprep.subr.bf16.mxu0 0
    %254 = vmatpush1.bf16.msra.mxu0 0
    %255 = vmatprep.subr.bf16.mxu0 0
    %256 = vmatpush1.bf16.msra.mxu0 0
    %257 = vmatprep.subr.bf16.mxu0 0
    %258 = vmatpush1.bf16.msra.mxu0 0
    %259 = vmatprep.subr.bf16.mxu0 0
    %260 = vmatpush1.bf16.msra.mxu0 0
    %261 = vmatprep.subr.bf16.mxu0 0
    %262 = vmatpush1.bf16.msra.mxu0 0
    %263 = vmatprep.subr.bf16.mxu0 0
    %264 = vmatpush1.bf16.msra.mxu0 0
    %265 = vmatprep.subr.bf16.mxu0 0
    %266 = vmatpush1.bf16.msra.mxu0 0
    %267 = vmatprep.subr.bf16.mxu0 0
    %268 = vmatpush1.bf16.msra.mxu0 0
    %269 = vmatprep.subr.bf16.mxu0 0
    %270 = vmatpush1.bf16.msra.mxu0 0
    %271 = vmatprep.mubr.bf16.mxu0 0
    %272 = vmatmul.mubr.bf16.gmra.mrb[0].mxu0 %v234
    %v273 = vpop.f32.mrb[0].mxu0
    %v274 = vadd.f32 %v205, %v273
    %v275 = vpop.f32.mrb[0].mxu0
    %v276 = vpop.f32.mrb[0].mxu0
    %v277 = vadd.f32 %v210, %v276
    %v278 = vpop.f32.mrb[0].mxu0
    %279 = vmatprep.mubr.bf16.mxu0 0
    %280 = vmatmul.mubr.bf16.gmra.mrb[0].mxu0 %v237
    %v281 = vpop.f32.mrb[0].mxu0
    %v282 = vadd.f32 %v215, %v281
    %v283 = vpop.f32.mrb[0].mxu0
    %v284 = vpop.f32.mrb[0].mxu0
    %v285 = vadd.f32 %v220, %v284
    %v286 = vpop.f32.mrb[0].mxu0
    %287 = vdwg.mxu0
    %v288 = vmax.f32 %v274, 0.0
    %v289 = vmax.f32 %v277, 0.0
    %v290 = vmax.f32 %v282, 0.0
    %v291 = vmax.f32 %v285, 0.0
    %v292 = vld [vmem:[%s3] sm:$0xf]
    %v293 = vpack.c.bf16 %v289, %v288
    %v294 = vpack.c.bf16 %v291, %v290
    %vm295 = vcmask 261120
    %v297 = vsel %vm295, %v292, 0
    %299 = vmatprep.subr.bf16.mxu0 0
    %300 = vmatpush1.bf16.msra.mxu0 %v293
    %301 = vmatprep.subr.bf16.mxu0 0
    %302 = vmatpush1.bf16.msra.mxu0 %v294
    %303 = vmatprep.subr.bf16.mxu0 0
    %304 = vmatpush1.bf16.msra.mxu0 0
    %305 = vmatprep.subr.bf16.mxu0 0
    %306 = vmatpush1.bf16.msra.mxu0 0
    %307 = vmatprep.subr.bf16.mxu0 0
    %308 = vmatpush1.bf16.msra.mxu0 0
    %309 = vmatprep.subr.bf16.mxu0 0
    %310 = vmatpush1.bf16.msra.mxu0 0
    %311 = vmatprep.subr.bf16.mxu0 0
    %312 = vmatpush1.bf16.msra.mxu0 0
    %313 = vmatprep.subr.bf16.mxu0 0
    %314 = vmatpush1.bf16.msra.mxu0 0
    %315 = vmatprep.subr.bf16.mxu0 0
    %316 = vmatpush1.bf16.msra.mxu0 0
    %317 = vmatprep.subr.bf16.mxu0 0
    %318 = vmatpush1.bf16.msra.mxu0 0
    %319 = vmatprep.subr.bf16.mxu0 0
    %320 = vmatpush1.bf16.msra.mxu0 0
    %321 = vmatprep.subr.bf16.mxu0 0
    %322 = vmatpush1.bf16.msra.mxu0 0
    %323 = vmatprep.subr.bf16.mxu0 0
    %324 = vmatpush1.bf16.msra.mxu0 0
    %325 = vmatprep.subr.bf16.mxu0 0
    %326 = vmatpush1.bf16.msra.mxu0 0
    %327 = vmatprep.subr.bf16.mxu0 0
    %328 = vmatpush1.bf16.msra.mxu0 0
    %329 = vmatprep.subr.bf16.mxu0 0
    %330 = vmatpush1.bf16.msra.mxu0 0
    %331 = vmatprep.mubr.bf16.mxu0 0
    %332 = vmatmul.mubr.bf16.gmra.mrb[0].mxu0 %v297
    %v333 = vpop.f32.mrb[0].mxu0
    %v334 = vadd.f32 0.0, %v333
    %v335 = vpop.f32.mrb[0].mxu0
    %v336 = vpop.f32.mrb[0].mxu0
    %v337 = vpop.f32.mrb[0].mxu0
    %338 = vdwg.mxu0
    %340 = vset.pattern.permute.xlu0 0
    %341 = vperm.xlu0 %340, %v34
    %v342 = vpop.permute.xlu0 %341
    %v344 = vadd.f32 %v334, %v342
    %v345 = vand.u32 2147483647, %v344
    %v346 = vsub.f32 0.0, %v345
    %v347 = vmul.f32 %v346, 1.442695
    %v348 = vpow.pop %v347
    %vm349 = vcmp.ge.f32.partialorder %v344, 0.0
    %v350 = vadd.f32 %v348, 1.0
    %v351 = vrcp.pop %v350
    %v352 = vmul.f32 1.0, %v351
    %v353 = vmul.f32 %v348, %v351
    %v354 = vsel %vm349, %v352, %v353
    %vm355 = vcmask 57344
    %356 = vst.msk [vmem:[#allocation2] sm:$0x1] %vm355, %v354
    // Predicated region
    $region22: #{net_forward.1} parent=1 // pred_check
      _
    $region23: #{net_forward.1} parent=1 // pred_check_branch
      %358 = sbr.rel (0) target = $region25
    $region24: #{net_forward.1} parent=1 // pred_region
      %s360 = ssub.s32 16, 16
      %361 = vsyncadd [#allocation3], %s360
      %s363 = sshll.u32 [#allocation2], 4
      %s364 = int_to_ptr.vmem [resolvable:$true] %s363
      %366 = dma.vmem_to_hbm [thread:$0]  %s364, 16, %s5, [#allocation3]
    $region25: #{net_forward.1} parent=1 // pred_fallthru
      _
    // Predicated region
    $region26: #{net_forward.1} parent=1 // pred_check
      _
    $region27: #{net_forward.1} parent=1 // pred_check_branch
      %368 = sbr.rel (0) target = $region29
    $region28: #{net_forward.1} parent=1 // pred_region
      %369 = dma.done [#allocation3], 16
    $region29: #{net_forward.1} parent=1 // pred_fallthru
      _
    %370 = vsyncpa [#allocation3], 1

</llo_original>
